<compile_context>
chip_gen: v5e
topology: v5e:2x2
jax: 0.10.0
libtpu: 0.0.40
codegen_flags: <defaults>
</compile_context>

<pallas_src>
import functools
import math

import numpy as np

import jax
import jax.numpy as jnp
from jax.experimental import pallas as pl
from jax.experimental.pallas import tpu as pltpu


def _round_up(x, m):
    return ((x + m - 1) // m) * m


def _ohem_ce_kernel(logits_ref, labels_ref, loss_ref, ssum_ref, scnt_ref,
                    *, hw, thresh, chunk):
    """Per-pixel CE (pixels on lanes, classes on sublanes) + fused OHEM stats.

    logits_ref: (1, C, tile_n)   labels_ref: (1, 1, tile_n) int32
    loss_ref  : (1, 1, tile_n) f32
    ssum_ref / scnt_ref: (1, 1, 8, 128) f32 (per-tile scalar, broadcast-filled)
    """
    i = pl.program_id(1)                    # pixel-tile index within the sample
    tile_n = logits_ref.shape[-1]
    num_classes = logits_ref.shape[1]
    n_sub = tile_n // chunk                 # static

    def body(s, carry):
        acc_sum, acc_cnt = carry            # (1, 1) f32 each
        off = pl.multiple_of(s * chunk, chunk)

        x = logits_ref[0, :, pl.ds(off, chunk)].astype(jnp.float32)   # (C, chunk)
        lbl = labels_ref[0, :, pl.ds(off, chunk)]                     # (1, chunk)

        # numerically stable log-sum-exp over the class (sublane) axis
        m = jnp.max(x, axis=0, keepdims=True)                         # (1, chunk)
        lse = m + jnp.log(jnp.sum(jnp.exp(x - m), axis=0, keepdims=True))

        # gather x[label, p] via a tiny unrolled class loop (no iota temp)
        picked = jnp.zeros((1, chunk), jnp.float32)
        for c in range(num_classes):
            picked = picked + jnp.where(lbl == c, x[c:c + 1, :], 0.0)

        loss = lse - picked                                           # (1, chunk)
        # per-pixel loss (lane-dense store; OOB lanes of a ragged last tile
        # are dropped by Pallas automatically)
        loss_ref[0, :, pl.ds(off, chunk)] = loss

        # fused "above threshold" statistics, masked for the ragged tail
        pix = i * tile_n + off + jax.lax.broadcasted_iota(
            jnp.int32, (1, chunk), 1)
        keep = (pix < hw) & (loss > thresh)
        acc_sum = acc_sum + jnp.sum(jnp.where(keep, loss, 0.0), keepdims=True)
        acc_cnt = acc_cnt + jnp.sum(jnp.where(keep, 1.0, 0.0), keepdims=True)
        return acc_sum, acc_cnt

    zero = jnp.zeros((1, 1), jnp.float32)
    acc_sum, acc_cnt = jax.lax.fori_loop(0, n_sub, body, (zero, zero),
                                         unroll=True)

    # Broadcast the per-tile scalars into a lane-dense (8, 128) slab so the
    # output BlockSpec satisfies the (8, 128) tiling rule; the wrapper reads
    # element [..., 0, 0] of each tile.
    ssum_ref[...] = jnp.broadcast_to(acc_sum.reshape(1, 1, 1, 1), ssum_ref.shape)
    scnt_ref[...] = jnp.broadcast_to(acc_cnt.reshape(1, 1, 1, 1), scnt_ref.shape)


def _ce_and_stats(logits_ncm, labels_n1m, *, thresh, tile_n, chunk):
    """logits_ncm: (N, C, HW), labels_n1m: (N, 1, HW) int32.

    Returns (loss (N,1,HW) f32, sum_above (N,T,8,128), cnt_above (N,T,8,128)).
    """
    N, C, HW = logits_ncm.shape
    T = pl.cdiv(HW, tile_n)

    kernel = functools.partial(_ohem_ce_kernel, hw=HW, thresh=thresh, chunk=chunk)

    # VMEM budget: double-buffered blocks plus temporaries; keep <= 48 MiB so
    # the same config is safe on v7x (64 MiB VMEM).  On v5e/v6e (128 MiB) you
    # can sweep tile_cap higher and raise this limit.
    block_bytes = (C * tile_n * logits_ncm.dtype.itemsize
                   + tile_n * 4            # labels
                   + tile_n * 4            # loss
                   + 2 * 8 * 128 * 4)      # stats
    vmem_limit = int(min(max(32 * 1024 * 1024, 4 * block_bytes),
                         48 * 1024 * 1024))

    return pl.pallas_call(
        kernel,
        out_shape=(
            jax.ShapeDtypeStruct((N, 1, HW), jnp.float32),
            jax.ShapeDtypeStruct((N, T, 8, 128), jnp.float32),
            jax.ShapeDtypeStruct((N, T, 8, 128), jnp.float32),
        ),
        grid_spec=pltpu.PrefetchScalarGridSpec(
            num_scalar_prefetch=0,
            grid=(N, T),
            in_specs=[
                # full class axis on sublanes, tile_n pixels on lanes
                pl.BlockSpec((1, C, tile_n), lambda n, i: (n, 0, i)),
                pl.BlockSpec((1, 1, tile_n), lambda n, i: (n, 0, i)),
            ],
            out_specs=[
                pl.BlockSpec((1, 1, tile_n), lambda n, i: (n, 0, i)),
                pl.BlockSpec((1, 1, 8, 128), lambda n, i: (n, i, 0, 0)),
                pl.BlockSpec((1, 1, 8, 128), lambda n, i: (n, i, 0, 0)),
            ],
        ),
        compiler_params=pltpu.CompilerParams(
            # both grid axes are independent -> shards across v7x's 2 TCs
            dimension_semantics=("parallel", "parallel"),
            vmem_limit_bytes=vmem_limit,
        ),
    )(logits_ncm, labels_n1m)


@functools.partial(jax.jit, static_argnames=("thresh_prob", "n_min", "tile_cap"))
def ohem_ce_loss(logits_nchw, labels_nhw, thresh_prob=0.7, n_min=64,
                 tile_cap=32768):
    """Reproduces OhemCELoss.forward.

    logits_nchw: (N, C, H, W) float (f32 or bf16); labels_nhw: (N, H, W) int.
    thresh_prob / n_min are construction-time constants (static).
    """
    N, C, H, W = logits_nchw.shape
    HW = H * W
    M = N * HW
    if n_min + 1 > M:
        raise ValueError(
            f"n_min + 1 ({n_min + 1}) must be <= number of pixels ({M})")

    # -log(thresh) in f32, baked into the kernel as a constant.
    thresh = float(np.float32(-np.log(np.float32(thresh_prob))))

    # NCHW -> (N, C, HW) / (N, 1, HW): pure reshapes, no transpose, no pad.
    logits_ncm = logits_nchw.reshape(N, C, HW)
    labels_n1m = labels_nhw.reshape(N, 1, HW).astype(jnp.int32)

    # ---- pixel-tile sizing ----------------------------------------------
    # Large lane-dense tiles (cap 32K lanes); sweep 32768/65536 on v5e/v6e.
    tile_n = min(tile_cap, _round_up(HW, 128))
    # keep >= 2 parallel grid steps when possible (v7x has 2 TensorCores)
    while N * pl.cdiv(HW, tile_n) < 2 and tile_n > 128:
        tile_n = _round_up(max(128, tile_n // 2), 128)
    # in-kernel sub-chunk: largest 128-multiple divisor of tile_n, <= 2048
    chunk = 128
    for cand in (2048, 1024, 512, 256, 128):
        if tile_n % cand == 0:
            chunk = cand
            break

    # ---- fused CE + OHEM threshold statistics (Pallas) -------------------
    loss, ssum, scnt = _ce_and_stats(logits_ncm, labels_n1m,
                                     thresh=thresh, tile_n=tile_n, chunk=chunk)
    loss_flat = loss.reshape(M)                       # exactly M pixels, no pad

    sum_above = jnp.sum(ssum[:, :, 0, 0])
    n_above = jnp.sum(scnt[:, :, 0, 0])
    mean_above = sum_above / jnp.maximum(n_above, 1.0)

    # ---- two-stage top-(n_min+1) instead of a full sort -------------------
    k = n_min + 1
    chunk_k = max(2048, k)
    rows = M // chunk_k
    if rows >= 2:
        head = jax.lax.top_k(
            loss_flat[: rows * chunk_k].reshape(rows, chunk_k), k)[0]
        cand_set = head.reshape(-1)
        tail = loss_flat[rows * chunk_k:]
        if tail.shape[0]:
            cand_set = jnp.concatenate([cand_set, tail])
        topk = jax.lax.top_k(cand_set, k)[0]
    else:
        topk = jax.lax.top_k(loss_flat, k)[0]

    use_thresh = topk[n_min] > thresh
    mean_topk = jnp.mean(topk[:n_min])
    return jnp.where(use_thresh, mean_above, mean_topk)


def _reference(logits_nchw, labels_nhw, thresh_prob, n_min):
    """Pure-JAX reference mirroring the PyTorch forward (full sort, eager)."""
    N, C, H, W = logits_nchw.shape
    x = jnp.transpose(logits_nchw, (0, 2, 3, 1)).reshape(-1, C).astype(jnp.float32)
    lbl = labels_nhw.reshape(-1)
    logp = jax.nn.log_softmax(x, axis=-1)
    loss = -jnp.take_along_axis(logp, lbl[:, None], axis=-1)[:, 0]
    thresh = np.float32(-np.log(np.float32(thresh_prob)))
    s = jnp.sort(loss)[::-1]
    if s[n_min] > thresh:
        kept = loss[loss > thresh]
    else:
        kept = s[:n_min]
    return jnp.mean(kept)


if __name__ == "__main__":
    key = jax.random.PRNGKey(0)
    k1, k2 = jax.random.split(key)

    N, C, H, W = 2, 4, 16, 16
    n_min = 64          # e.g. N*H*W // 8
    thresh_prob = 0.7

    logits = jax.random.normal(k1, (N, C, H, W), dtype=jnp.float32) * 2.0
    labels = jax.random.randint(k2, (N, H, W), 0, C, dtype=jnp.int32)

    out = ohem_ce_loss(logits, labels, thresh_prob=thresh_prob, n_min=n_min)
    out = jax.block_until_ready(out)

    ref = _reference(logits, labels, thresh_prob, n_min)
    assert jnp.allclose(out, ref, rtol=1e-5, atol=1e-5), (out, ref)

    print("KERNEL_OK")
</pallas_src>

<mosaic_0001>
module attributes {stable_mosaic.version = 11 : i64} {
  func.func @_ohem_ce_kernel(%arg0: i32, %arg1: i32, %arg2: memref<1x4x256xf32, #tpu.memory_space<vmem>>, %arg3: memref<1x1x256xi32, #tpu.memory_space<vmem>>, %arg4: memref<1x1x256xf32, #tpu.memory_space<vmem>>, %arg5: memref<1x1x8x128xf32, #tpu.memory_space<vmem>>, %arg6: memref<1x1x8x128xf32, #tpu.memory_space<vmem>>) attributes {dimension_semantics = [#tpu.dimension_semantics<parallel>, #tpu.dimension_semantics<parallel>], iteration_bounds = array<i64: 2, 1>, scalar_prefetch = 0 : i64, scratch_operands = 0 : i64, tpu.core_type = #tpu.core_type<tc>, window_params = [{transform_indices = @transform_0, window_bounds = array<i64: 1, 4, 256>}, {transform_indices = @transform_1, window_bounds = array<i64: 1, 1, 256>}, {transform_indices = @transform_2, window_bounds = array<i64: 1, 1, 256>}, {transform_indices = @transform_3, window_bounds = array<i64: 1, 1, 8, 128>}, {transform_indices = @transform_4, window_bounds = array<i64: 1, 1, 8, 128>}]} {
    %cst = arith.constant 0.000000e+00 : f32
    %0 = vector.broadcast %cst : f32 to vector<1x1xf32>
    %c0_i32 = arith.constant 0 : i32
    %c256_i32 = arith.constant 256 : i32
    %1 = arith.muli %c0_i32, %c256_i32 : i32
    %2 = tpu.assume_multiple %1, 256 : i32
    %c0 = arith.constant 0 : index
    %c0_0 = arith.constant 0 : index
    %3 = arith.index_cast %2 : i32 to index
    %4 = vector.load %arg2[%c0, %c0_0, %3] : memref<1x4x256xf32, #tpu.memory_space<vmem>>, vector<1x4x256xf32>
    %5 = vector.shape_cast %4 : vector<1x4x256xf32> to vector<4x256xf32>
    %c0_1 = arith.constant 0 : index
    %c0_2 = arith.constant 0 : index
    %6 = arith.index_cast %2 : i32 to index
    %7 = vector.load %arg3[%c0_1, %c0_2, %6] : memref<1x1x256xi32, #tpu.memory_space<vmem>>, vector<1x1x256xi32>
    %8 = vector.shape_cast %7 : vector<1x1x256xi32> to vector<1x256xi32>
    %cst_3 = arith.constant dense<0xFF800000> : vector<256xf32>
    %9 = vector.multi_reduction <maximumf>, %5, %cst_3 [0] : vector<4x256xf32> to vector<256xf32>
    %10 = vector.shape_cast %9 : vector<256xf32> to vector<1x256xf32>
    %11 = vector.broadcast %10 : vector<1x256xf32> to vector<4x256xf32>
    %12 = arith.subf %5, %11 : vector<4x256xf32>
    %13 = math.exp %12 : vector<4x256xf32>
    %cst_4 = arith.constant dense<0.000000e+00> : vector<256xf32>
    %14 = vector.multi_reduction <add>, %13, %cst_4 [0] : vector<4x256xf32> to vector<256xf32>
    %15 = vector.shape_cast %14 : vector<256xf32> to vector<1x256xf32>
    %16 = math.log %15 : vector<1x256xf32>
    %17 = arith.addf %10, %16 : vector<1x256xf32>
    %cst_5 = arith.constant 0.000000e+00 : f32
    %18 = vector.broadcast %cst_5 : f32 to vector<1x256xf32>
    %c0_i32_6 = arith.constant 0 : i32
    %19 = vector.broadcast %c0_i32_6 : i32 to vector<1x256xi32>
    %20 = arith.cmpi eq, %8, %19 : vector<1x256xi32>
    %21 = vector.extract_strided_slice %5 {offsets = [0, 0], sizes = [1, 256], strides = [1, 1]} : vector<4x256xf32> to vector<1x256xf32>
    %cst_7 = arith.constant 0.000000e+00 : f32
    %22 = vector.broadcast %cst_7 : f32 to vector<1x256xf32>
    %23 = arith.select %20, %21, %22 : vector<1x256xi1>, vector<1x256xf32>
    %24 = arith.addf %18, %23 : vector<1x256xf32>
    %c1_i32 = arith.constant 1 : i32
    %25 = vector.broadcast %c1_i32 : i32 to vector<1x256xi32>
    %26 = arith.cmpi eq, %8, %25 : vector<1x256xi32>
    %27 = vector.extract_strided_slice %5 {offsets = [1, 0], sizes = [1, 256], strides = [1, 1]} : vector<4x256xf32> to vector<1x256xf32>
    %cst_8 = arith.constant 0.000000e+00 : f32
    %28 = vector.broadcast %cst_8 : f32 to vector<1x256xf32>
    %29 = arith.select %26, %27, %28 : vector<1x256xi1>, vector<1x256xf32>
    %30 = arith.addf %24, %29 : vector<1x256xf32>
    %c2_i32 = arith.constant 2 : i32
    %31 = vector.broadcast %c2_i32 : i32 to vector<1x256xi32>
    %32 = arith.cmpi eq, %8, %31 : vector<1x256xi32>
    %33 = vector.extract_strided_slice %5 {offsets = [2, 0], sizes = [1, 256], strides = [1, 1]} : vector<4x256xf32> to vector<1x256xf32>
    %cst_9 = arith.constant 0.000000e+00 : f32
    %34 = vector.broadcast %cst_9 : f32 to vector<1x256xf32>
    %35 = arith.select %32, %33, %34 : vector<1x256xi1>, vector<1x256xf32>
    %36 = arith.addf %30, %35 : vector<1x256xf32>
    %c3_i32 = arith.constant 3 : i32
    %37 = vector.broadcast %c3_i32 : i32 to vector<1x256xi32>
    %38 = arith.cmpi eq, %8, %37 : vector<1x256xi32>
    %39 = vector.extract_strided_slice %5 {offsets = [3, 0], sizes = [1, 256], strides = [1, 1]} : vector<4x256xf32> to vector<1x256xf32>
    %cst_10 = arith.constant 0.000000e+00 : f32
    %40 = vector.broadcast %cst_10 : f32 to vector<1x256xf32>
    %41 = arith.select %38, %39, %40 : vector<1x256xi1>, vector<1x256xf32>
    %42 = arith.addf %36, %41 : vector<1x256xf32>
    %43 = arith.subf %17, %42 : vector<1x256xf32>
    %c0_11 = arith.constant 0 : index
    %c0_12 = arith.constant 0 : index
    %44 = arith.index_cast %2 : i32 to index
    %45 = vector.load %arg4[%c0_11, %c0_12, %44] : memref<1x1x256xf32, #tpu.memory_space<vmem>>, vector<1x1x256xf32>
    %46 = vector.shape_cast %45 : vector<1x1x256xf32> to vector<1x256xf32>
    %47 = vector.shape_cast %43 : vector<1x256xf32> to vector<1x1x256xf32>
    tpu.vector_store %arg4[%c0_11, %c0_12, %44], %47 {strides = array<i32>} : memref<1x1x256xf32, #tpu.memory_space<vmem>>, vector<1x1x256xf32>,
    %c256_i32_13 = arith.constant 256 : i32
    %48 = arith.muli %arg1, %c256_i32_13 : i32
    %49 = arith.addi %48, %2 : i32
    %50 = tpu.iota {dimensions = array<i32: 1>} : vector<1x256xi32>
    %51 = vector.broadcast %49 : i32 to vector<1x256xi32>
    %52 = arith.addi %51, %50 : vector<1x256xi32>
    %c256_i32_14 = arith.constant 256 : i32
    %53 = vector.broadcast %c256_i32_14 : i32 to vector<1x256xi32>
    %54 = arith.cmpi slt, %52, %53 : vector<1x256xi32>
    %cst_15 = arith.constant 0.356674939 : f32
    %55 = vector.broadcast %cst_15 : f32 to vector<1x256xf32>
    %56 = arith.cmpf ogt, %43, %55 : vector<1x256xf32>
    %57 = arith.andi %54, %56 : vector<1x256xi1>
    %cst_16 = arith.constant 0.000000e+00 : f32
    %58 = vector.broadcast %cst_16 : f32 to vector<1x256xf32>
    %59 = arith.select %57, %43, %58 : vector<1x256xi1>, vector<1x256xf32>
    %60 = vector.shape_cast %59 : vector<1x256xf32> to vector<1x1x256xf32>
    %cst_17 = arith.constant dense<0.000000e+00> : vector<1xf32>
    %61 = vector.multi_reduction <add>, %60, %cst_17 [1, 2] : vector<1x1x256xf32> to vector<1xf32>
    %62 = vector.shape_cast %61 : vector<1xf32> to vector<1x1x1xf32>
    %63 = vector.extract %62[0, 0, 0] : f32 from vector<1x1x1xf32>
    %64 = vector.broadcast %63 : f32 to vector<1x1xf32>
    %65 = arith.addf %0, %64 : vector<1x1xf32>
    %cst_18 = arith.constant 1.000000e+00 : f32
    %cst_19 = arith.constant 0.000000e+00 : f32
    %66 = vector.broadcast %cst_18 : f32 to vector<1x256xf32>
    %67 = vector.broadcast %cst_19 : f32 to vector<1x256xf32>
    %68 = arith.select %57, %66, %67 : vector<1x256xi1>, vector<1x256xf32>
    %69 = vector.shape_cast %68 : vector<1x256xf32> to vector<1x1x256xf32>
    %cst_20 = arith.constant dense<0.000000e+00> : vector<1xf32>
    %70 = vector.multi_reduction <add>, %69, %cst_20 [1, 2] : vector<1x1x256xf32> to vector<1xf32>
    %71 = vector.shape_cast %70 : vector<1xf32> to vector<1x1x1xf32>
    %72 = vector.extract %71[0, 0, 0] : f32 from vector<1x1x1xf32>
    %73 = vector.broadcast %72 : f32 to vector<1x1xf32>
    %74 = arith.addf %0, %73 : vector<1x1xf32>
    %c1_i32_21 = arith.constant 1 : i32
    %75 = vector.shape_cast %65 : vector<1x1xf32> to vector<1x1x1x1xf32>
    %76 = vector.shape_cast %75 : vector<1x1x1x1xf32> to vector<1x1x1x1xf32>
    %77 = vector.broadcast %76 : vector<1x1x1x1xf32> to vector<1x1x8x128xf32>
    %c0_22 = arith.constant 0 : index
    %c0_23 = arith.constant 0 : index
    %c0_24 = arith.constant 0 : index
    %c0_25 = arith.constant 0 : index
    %78 = vector.load %arg5[%c0_22, %c0_23, %c0_24, %c0_25] : memref<1x1x8x128xf32, #tpu.memory_space<vmem>>, vector<1x1x8x128xf32>
    tpu.vector_store %arg5[%c0_22, %c0_23, %c0_24, %c0_25], %77 {strides = array<i32>} : memref<1x1x8x128xf32, #tpu.memory_space<vmem>>, vector<1x1x8x128xf32>,
    %79 = vector.shape_cast %74 : vector<1x1xf32> to vector<1x1x1x1xf32>
    %80 = vector.shape_cast %79 : vector<1x1x1x1xf32> to vector<1x1x1x1xf32>
    %81 = vector.broadcast %80 : vector<1x1x1x1xf32> to vector<1x1x8x128xf32>
    %c0_26 = arith.constant 0 : index
    %c0_27 = arith.constant 0 : index
    %c0_28 = arith.constant 0 : index
    %c0_29 = arith.constant 0 : index
    %82 = vector.load %arg6[%c0_26, %c0_27, %c0_28, %c0_29] : memref<1x1x8x128xf32, #tpu.memory_space<vmem>>, vector<1x1x8x128xf32>
    tpu.vector_store %arg6[%c0_26, %c0_27, %c0_28, %c0_29], %81 {strides = array<i32>} : memref<1x1x8x128xf32, #tpu.memory_space<vmem>>, vector<1x1x8x128xf32>,
    return
  }
  func.func @transform_0(%arg0: i32, %arg1: i32) -> (i32, i32, i32) {
    %c0_i32 = arith.constant 0 : i32
    %c0_i32_0 = arith.constant 0 : i32
    return %arg0, %c0_i32, %arg1 : i32, i32, i32
  }
  func.func @transform_1(%arg0: i32, %arg1: i32) -> (i32, i32, i32) {
    %c0_i32 = arith.constant 0 : i32
    %c0_i32_0 = arith.constant 0 : i32
    return %arg0, %c0_i32, %arg1 : i32, i32, i32
  }
  func.func @transform_2(%arg0: i32, %arg1: i32) -> (i32, i32, i32) {
    %c0_i32 = arith.constant 0 : i32
    %c0_i32_0 = arith.constant 0 : i32
    return %arg0, %c0_i32, %arg1 : i32, i32, i32
  }
  func.func @transform_3(%arg0: i32, %arg1: i32) -> (i32, i32, i32, i32) {
    %c0_i32 = arith.constant 0 : i32
    %c0_i32_0 = arith.constant 0 : i32
    %c0_i32_1 = arith.constant 0 : i32
    return %arg0, %arg1, %c0_i32, %c0_i32_0 : i32, i32, i32, i32
  }
  func.func @transform_4(%arg0: i32, %arg1: i32) -> (i32, i32, i32, i32) {
    %c0_i32 = arith.constant 0 : i32
    %c0_i32_0 = arith.constant 0 : i32
    %c0_i32_1 = arith.constant 0 : i32
    return %arg0, %arg1, %c0_i32, %c0_i32_0 : i32, i32, i32, i32
  }
}

</mosaic_0001>

<llo_original>
// kernel: ohem_ce_loss.1
$region0: #{ohem_ce_loss.1}
  #allocation0 [shape = 'u32[]', space=smem, size = 0x4, offset = 0x4, fixed_abs, tag = 'smem constant byte address 0x4 - core index']
  #allocation1 [shape = 'u32[72,128]{1,0:T(1,128)}', space=vmem, size = 0x9000, scoped, tag = 'internal scratch']
  %s0 = inlined_call_operand.vmem [shape: f32[2,4,256], index: 0, kind: input, shape index: {}]
  %s1 = inlined_call_operand.vmem [shape: s32[2,1,256], index: 1, kind: input, shape index: {}]
  %s2 = inlined_call_operand.vmem [shape: f32[2,1,256], index: 2, kind: output, shape index: {0}]
  %s3 = inlined_call_operand.vmem [shape: f32[2,1,8,128], index: 3, kind: output, shape index: {1}]
  %s4 = inlined_call_operand.vmem [shape: f32[2,1,8,128], index: 4, kind: output, shape index: {2}]
  %5 = xla_tuple %s2, %s3, %s4
  %s6 = sld [smem:[#allocation0]]
  $region57: #{ohem_ce_loss.1} parent=0
    _
  %s8 = ssub.s32 1, %s6
  %s9 = scalar_select 0, %s8, %s6
  loop: start=0, step=1, limit=4
  $region2: #{ohem_ce_loss.1} parent=0 // loop_pre_header
    _
  $region3: #{ohem_ce_loss.1} parent=0 // loop_header
    %s11 = sphi 0, %s15
    %p12 = scmp.ge.s32.totalorder %s11, 4
    %s18 = sphi 0, %s30
    %s19 = sphi 0, %s26
    %s20 = sphi 0, %s18
    %s21 = sphi 0, %s19
    %s22 = sphi 0, %s20
    %s23 = sphi 0, %s21
    %s35 = sphi 0, %s37
    %s38 = sphi 0, %s35
    %s39 = sphi 0, %s38
    %s55 = sphi 0, %s39
    %s63 = sphi 0, %s65
    %s66 = sphi 0, %s63
    %s67 = sphi 0, %s66
    %s83 = sphi 0, %s67
    %s91 = sphi 0, %s93
    %s94 = sphi 0, %s91
    %s95 = sphi 0, %s94
    %s111 = sphi 0, %s95
    %s119 = sphi 0, %s121
    %s122 = sphi 0, %s119
    %s123 = sphi 0, %s122
    %s139 = sphi 0, %s123
    %s147 = sphi 0, %s149
    %s150 = sphi 0, %s147
    %s151 = sphi 0, %s150
    %s167 = sphi 0, %s151
  $region4: #{ohem_ce_loss.1} parent=0 // loop_header_branch
    %14 = sbr.rel (%p12) target = $region8
  $region5: #{ohem_ce_loss.1} parent=0 // loop_body
    %s16 = ssub.s32 %s11, 1
    %s17 = ssub.s32 %s11, 2
    %s24 = sadd.s32 1, %s19
    %p25 = scmp.ge.s32.totalorder %s24, 1
    %s26 = scalar_select %p25, 0, %s24
    %s27 = sadd.s32 1, %s18
    %s28 = scalar_select %p25, %s27, %s18
    %p29 = scmp.ge.s32.totalorder %s28, 2
    %s30 = scalar_select %p29, 0, %s28
    %s31 = ssub.s32 %s18, %s30
    %s32 = ssub.s32 %s19, %s26
    %s33 = sor.u32 %s31, %s32
    %p34 = scmp.eq.s32.totalorder %s33, 0
    %s36 = sadd.s32 %s35, 1
    %s37 = scalar_select %p34, %s35, %s36
    %p40 = pneg %p34
    %p41 = scmp.eq.s32.totalorder %s11, 1
    %p42 = por %p40, %p41
    %p43 = scmp.ne.s32.totalorder %s35, %s38
    %p44 = scmp.eq.s32.totalorder %s11, 0
    %p45 = por %p43, %p44
    %p46 = scmp.ne.s32.totalorder %s35, %s38
    %p47 = scmp.eq.s32.totalorder %s16, 1
    %p48 = por %p46, %p47
    %p49 = scmp.ne.s32.totalorder %s38, %s39
    %p50 = scmp.eq.s32.totalorder %s16, 0
    %p51 = por %p49, %p50
    %p52 = scmp.ne.s32.totalorder %s38, %s39
    %p53 = scmp.eq.s32.totalorder %s17, 1
    %p54 = por %p52, %p53
    %p56 = scmp.ne.s32.totalorder %s39, %s55
    %p57 = scmp.eq.s32.totalorder %s17, 0
    %p58 = por %p56, %p57
    %s59 = ssub.s32 %s18, %s30
    %s60 = ssub.s32 %s19, %s26
    %s61 = sor.u32 %s59, %s60
    %p62 = scmp.eq.s32.totalorder %s61, 0
    %s64 = sadd.s32 %s63, 1
    %s65 = scalar_select %p62, %s63, %s64
    %p68 = pneg %p62
    %p69 = scmp.eq.s32.totalorder %s11, 1
    %p70 = por %p68, %p69
    %p71 = scmp.ne.s32.totalorder %s63, %s66
    %p72 = scmp.eq.s32.totalorder %s11, 0
    %p73 = por %p71, %p72
    %p74 = scmp.ne.s32.totalorder %s63, %s66
    %p75 = scmp.eq.s32.totalorder %s16, 1
    %p76 = por %p74, %p75
    %p77 = scmp.ne.s32.totalorder %s66, %s67
    %p78 = scmp.eq.s32.totalorder %s16, 0
    %p79 = por %p77, %p78
    %p80 = scmp.ne.s32.totalorder %s66, %s67
    %p81 = scmp.eq.s32.totalorder %s17, 1
    %p82 = por %p80, %p81
    %p84 = scmp.ne.s32.totalorder %s67, %s83
    %p85 = scmp.eq.s32.totalorder %s17, 0
    %p86 = por %p84, %p85
    %s87 = ssub.s32 %s18, %s30
    %s88 = ssub.s32 %s19, %s26
    %s89 = sor.u32 %s87, %s88
    %p90 = scmp.eq.s32.totalorder %s89, 0
    %s92 = sadd.s32 %s91, 1
    %s93 = scalar_select %p90, %s91, %s92
    %p96 = pneg %p90
    %p97 = scmp.eq.s32.totalorder %s11, 1
    %p98 = por %p96, %p97
    %p99 = scmp.ne.s32.totalorder %s91, %s94
    %p100 = scmp.eq.s32.totalorder %s11, 0
    %p101 = por %p99, %p100
    %p102 = scmp.ne.s32.totalorder %s91, %s94
    %p103 = scmp.eq.s32.totalorder %s16, 1
    %p104 = por %p102, %p103
    %p105 = scmp.ne.s32.totalorder %s94, %s95
    %p106 = scmp.eq.s32.totalorder %s16, 0
    %p107 = por %p105, %p106
    %p108 = scmp.ne.s32.totalorder %s94, %s95
    %p109 = scmp.eq.s32.totalorder %s17, 1
    %p110 = por %p108, %p109
    %p112 = scmp.ne.s32.totalorder %s95, %s111
    %p113 = scmp.eq.s32.totalorder %s17, 0
    %p114 = por %p112, %p113
    %s115 = ssub.s32 %s18, %s30
    %s116 = ssub.s32 %s19, %s26
    %s117 = sor.u32 %s115, %s116
    %p118 = scmp.eq.s32.totalorder %s117, 0
    %s120 = sadd.s32 %s119, 1
    %s121 = scalar_select %p118, %s119, %s120
    %p124 = pneg %p118
    %p125 = scmp.eq.s32.totalorder %s11, 1
    %p126 = por %p124, %p125
    %p127 = scmp.ne.s32.totalorder %s119, %s122
    %p128 = scmp.eq.s32.totalorder %s11, 0
    %p129 = por %p127, %p128
    %p130 = scmp.ne.s32.totalorder %s119, %s122
    %p131 = scmp.eq.s32.totalorder %s16, 1
    %p132 = por %p130, %p131
    %p133 = scmp.ne.s32.totalorder %s122, %s123
    %p134 = scmp.eq.s32.totalorder %s16, 0
    %p135 = por %p133, %p134
    %p136 = scmp.ne.s32.totalorder %s122, %s123
    %p137 = scmp.eq.s32.totalorder %s17, 1
    %p138 = por %p136, %p137
    %p140 = scmp.ne.s32.totalorder %s123, %s139
    %p141 = scmp.eq.s32.totalorder %s17, 0
    %p142 = por %p140, %p141
    %s143 = ssub.s32 %s18, %s30
    %s144 = ssub.s32 %s19, %s26
    %s145 = sor.u32 %s143, %s144
    %p146 = scmp.eq.s32.totalorder %s145, 0
    %s148 = sadd.s32 %s147, 1
    %s149 = scalar_select %p146, %s147, %s148
    %p152 = pneg %p146
    %p153 = scmp.eq.s32.totalorder %s11, 1
    %p154 = por %p152, %p153
    %p155 = scmp.ne.s32.totalorder %s147, %s150
    %p156 = scmp.eq.s32.totalorder %s11, 0
    %p157 = por %p155, %p156
    %p158 = scmp.ne.s32.totalorder %s147, %s150
    %p159 = scmp.eq.s32.totalorder %s16, 1
    %p160 = por %p158, %p159
    %p161 = scmp.ne.s32.totalorder %s150, %s151
    %p162 = scmp.eq.s32.totalorder %s16, 0
    %p163 = por %p161, %p162
    %p164 = scmp.ne.s32.totalorder %s150, %s151
    %p165 = scmp.eq.s32.totalorder %s17, 1
    %p166 = por %p164, %p165
    %p168 = scmp.ne.s32.totalorder %s151, %s167
    %p169 = scmp.eq.s32.totalorder %s17, 0
    %p170 = por %p168, %p169
    %p171 = scmp.le.s32.totalorder 1, %s11
    %p172 = scmp.lt.s32.totalorder %s11, 3
    %p173 = pnand %p171, %p172
    %p174 = pneg %p173
    // Predicated region
    $region9: #{ohem_ce_loss.1} parent=5 // pred_check
      _
    $region10: #{ohem_ce_loss.1} parent=5 // pred_check_branch
      %176 = sbr.rel (%p173) target = $region12
    $region11: #{ohem_ce_loss.1} parent=5 // pred_region
      %s177 = ssub.s32 %s11, 1
    $region12: #{ohem_ce_loss.1} parent=5 // pred_fallthru
      _
    %p178 = scmp.lt.s32.totalorder %s11, 2
    // Predicated region
    $region13: #{ohem_ce_loss.1} parent=5 // pred_check
      %p179 = pneg %p178
    $region14: #{ohem_ce_loss.1} parent=5 // pred_check_branch
      %181 = sbr.rel (%p179) target = $region16
    $region15: #{ohem_ce_loss.1} parent=5 // pred_region
      // Predicated region
      $region17: #{ohem_ce_loss.1} parent=15 // pred_check
        %p182 = pneg %p45
      $region18: #{ohem_ce_loss.1} parent=15 // pred_check_branch
        %184 = sbr.rel (%p182) target = $region20
      $region19: #{ohem_ce_loss.1} parent=15 // pred_region
        %s185 = smul.u32 2, %s19
        %p186 = scmp.lt.s32.totalorder %s18, 1
        %s187 = scalar_select %p186, %s18, 1
        %p188 = scmp.lt.s32.totalorder %s185, 1
        %s189 = scalar_select %p188, %s185, 1
        %s190 = smul.addr %s187, 2
        %s191 = sadd.s32 %s189, %s190
        %s192 = smul.addr %s191, 4
        %s193 = scalar_lea.vmem %s0, %s192
        %s194 = smul.u32 2, %s19
      $region20: #{ohem_ce_loss.1} parent=15 // pred_fallthru
        _
      // Predicated region
      $region21: #{ohem_ce_loss.1} parent=15 // pred_check
        %p195 = pneg %p73
      $region22: #{ohem_ce_loss.1} parent=15 // pred_check_branch
        %197 = sbr.rel (%p195) target = $region24
      $region23: #{ohem_ce_loss.1} parent=15 // pred_region
        %s198 = smul.u32 2, %s19
        %p199 = scmp.lt.s32.totalorder %s18, 1
        %s200 = scalar_select %p199, %s18, 1
        %p201 = scmp.lt.s32.totalorder %s198, 1
        %s202 = scalar_select %p201, %s198, 1
        %s203 = smul.addr %s200, 2
        %s204 = sadd.s32 %s202, %s203
        %s205 = scalar_lea.vmem %s1, %s204
        %s206 = smul.u32 2, %s19
      $region24: #{ohem_ce_loss.1} parent=15 // pred_fallthru
        _
    $region16: #{ohem_ce_loss.1} parent=5 // pred_fallthru
      _
    %p207 = scmp.le.s32.totalorder 1, %s11
    %p208 = scmp.lt.s32.totalorder %s11, 3
    %p209 = pnand %p207, %p208
    %p210 = pneg %p209
    // Predicated region
    $region25: #{ohem_ce_loss.1} parent=5 // pred_check
      _
    $region26: #{ohem_ce_loss.1} parent=5 // pred_check_branch
      %212 = sbr.rel (%p209) target = $region28
    $region27: #{ohem_ce_loss.1} parent=5 // pred_region
      %s213 = ssub.s32 %s11, 1
      %s214 = smul.u32 2, %s21
      %p215 = scmp.lt.s32.totalorder %s20, 1
      %s216 = scalar_select %p215, %s20, 1
      %p217 = scmp.lt.s32.totalorder %s214, 1
      %s218 = scalar_select %p217, %s214, 1
      %s219 = smul.addr %s216, 2
      %s220 = sadd.s32 %s218, %s219
      %s221 = smul.addr %s220, 4
      %s222 = scalar_lea.vmem %s0, %s221
      %p223 = pneg %p51
      %p224 = pneg %p48
      %s225 = smul.u32 2, %s21
      %p226 = scmp.lt.s32.totalorder %s20, 1
      %s227 = scalar_select %p226, %s20, 1
      %p228 = scmp.lt.s32.totalorder %s225, 1
      %s229 = scalar_select %p228, %s225, 1
      %s230 = smul.addr %s227, 2
      %s231 = sadd.s32 %s229, %s230
      %s232 = scalar_lea.vmem %s1, %s231
      %p233 = pneg %p79
      %p234 = pneg %p76
      %p235 = pneg %p107
      %p236 = pneg %p104
      %s237 = smul.u32 2, %s21
      %p238 = scmp.lt.s32.totalorder %s20, 1
      %s239 = scalar_select %p238, %s20, 1
      %p240 = scmp.lt.s32.totalorder %s237, 1
      %s241 = scalar_select %p240, %s237, 1
      %s242 = smul.addr %s239, 2
      %s243 = sadd.s32 %s241, %s242
      %s244 = scalar_lea.vmem %s2, %s243
      %p245 = pneg %p135
      %p246 = pneg %p132
      %p247 = scmp.lt.s32.totalorder %s20, 1
      %s248 = scalar_select %p247, %s20, 1
      %p249 = scmp.lt.s32.totalorder %s21, 0
      %s250 = scalar_select %p249, %s21, 0
      %s251 = sadd.s32 %s250, %s248
      %s252 = smul.addr %s251, 8
      %s253 = scalar_lea.vmem %s3, %s252
      %p254 = pneg %p163
      %p255 = pneg %p160
      %p256 = scmp.lt.s32.totalorder %s20, 1
      %s257 = scalar_select %p256, %s20, 1
      %p258 = scmp.lt.s32.totalorder %s21, 0
      %s259 = scalar_select %p258, %s21, 0
      %s260 = sadd.s32 %s259, %s257
      %s261 = smul.addr %s260, 8
      %s262 = scalar_lea.vmem %s4, %s261
      %s263 = smul.u32 2, %s21
      %p264 = scmp.lt.s32.totalorder %s20, 1
      %s265 = scalar_select %p264, %s20, 1
      %p266 = scmp.lt.s32.totalorder %s263, 1
      %s267 = scalar_select %p266, %s263, 1
      %s268 = smul.addr %s265, 2
      %s269 = sadd.s32 %s267, %s268
      %s270 = smul.addr %s269, 4
      %s271 = scalar_lea.vmem %s0, %s270
      %s272 = smul.u32 2, %s21
      %s273 = smul.u32 2, %s21
      %p274 = scmp.lt.s32.totalorder %s20, 1
      %s275 = scalar_select %p274, %s20, 1
      %p276 = scmp.lt.s32.totalorder %s273, 1
      %s277 = scalar_select %p276, %s273, 1
      %s278 = smul.addr %s275, 2
      %s279 = sadd.s32 %s277, %s278
      %s280 = scalar_lea.vmem %s1, %s279
      %s281 = smul.u32 2, %s21
      %s282 = smul.u32 2, %s21
      %p283 = scmp.lt.s32.totalorder %s20, 1
      %s284 = scalar_select %p283, %s20, 1
      %p285 = scmp.lt.s32.totalorder %s282, 1
      %s286 = scalar_select %p285, %s282, 1
      %s287 = smul.addr %s284, 2
      %s288 = sadd.s32 %s286, %s287
      %s289 = scalar_lea.vmem %s2, %s288
      %s290 = smul.u32 2, %s21
      %p291 = scmp.lt.s32.totalorder %s20, 1
      %s292 = scalar_select %p291, %s20, 1
      %p293 = scmp.lt.s32.totalorder %s21, 0
      %s294 = scalar_select %p293, %s21, 0
      %s295 = sadd.s32 %s294, %s292
      %s296 = smul.addr %s295, 8
      %s297 = scalar_lea.vmem %s3, %s296
      %p298 = scmp.lt.s32.totalorder %s20, 1
      %s299 = scalar_select %p298, %s20, 1
      %p300 = scmp.lt.s32.totalorder %s21, 0
      %s301 = scalar_select %p300, %s21, 0
      %s302 = sadd.s32 %s301, %s299
      %s303 = smul.addr %s302, 8
      %s304 = scalar_lea.vmem %s4, %s303
      %v305 = vld [vmem:[%s271] sm:$0xff]
      %v306 = vld [vmem:[%s280] sm:$0x3]
      %308 = vst [vmem:[#allocation1] ss:$2 sm:$0xff] %v305
      %v309 = vld.sshfl [vmem:[#allocation1] sm:$0xff pattern:$0x75316420]
      %v310 = vld.sshfl [vmem:[#allocation1 + $0x8] sm:$0xff pattern:$0x75316420]
      %vm313 = vcmask 1043456
      %v314 = vsel %vm313, %v309, -inf
      %v315 = vrot.slane %v314, 4
      %v316 = vmax.f32 %v314, %v315
      %v317 = vrot.slane %v316, 2
      %v318 = vmax.f32 %v316, %v317
      %v319 = vrot.slane %v318, 1
      %v320 = vmax.f32 %v318, %v319
      %v321 = vsel %vm313, %v310, -inf
      %v322 = vrot.slane %v321, 4
      %v323 = vmax.f32 %v321, %v322
      %v324 = vrot.slane %v323, 2
      %v325 = vmax.f32 %v323, %v324
      %v326 = vrot.slane %v325, 1
      %v327 = vmax.f32 %v325, %v326
      %v330 = vrot.slane %v327, 4
      %v331 = vsel %vm313, %v320, %v330
      %v333 = vsub.f32 %v305, %v331
      %v334 = vmul.f32 %v333, 1.442695
      %v335 = vpow.pop %v334
      %337 = vst [vmem:[#allocation1] ss:$2 sm:$0xff] %v335
      %v338 = vld.sshfl [vmem:[#allocation1] sm:$0xff pattern:$0x75316420]
      %v339 = vld.sshfl [vmem:[#allocation1 + $0x8] sm:$0xff pattern:$0x75316420]
      %v342 = vsel %vm313, %v338, 0.0
      %v343 = vrot.slane %v342, 4
      %v344 = vadd.f32 %v342, %v343
      %v345 = vrot.slane %v344, 2
      %v346 = vadd.f32 %v344, %v345
      %v347 = vrot.slane %v346, 1
      %v348 = vadd.f32 %v346, %v347
      %v349 = vsel %vm313, %v339, 0.0
      %v350 = vrot.slane %v349, 4
      %v351 = vadd.f32 %v349, %v350
      %v352 = vrot.slane %v351, 2
      %v353 = vadd.f32 %v351, %v352
      %v354 = vrot.slane %v353, 1
      %v355 = vadd.f32 %v353, %v354
      %v356 = vlog2.pop %v348
      %v357 = vmul.f32 %v356, 0.6931472
      %v358 = vlog2.pop %v355
      %v359 = vmul.f32 %v358, 0.6931472
      %v360 = vadd.f32 %v320, %v357
      %v361 = vadd.f32 %v327, %v359
      %vm362 = vcmp.eq.s32.totalorder %v306, 0
      %v363 = vrot.slane %v305, 3
      %vm364 = vcmask 1040384
      %v365 = vsel %vm364, %v305, %v363
      %v367 = vsel %vm362, %v365, 0.0
      %v368 = vadd.f32 %v367, 0.0
      %vm369 = vcmp.eq.s32.totalorder %v306, 1
      %370 = vst [vmem:[#allocation1] sm:$0xff] %v305
      %s371 = scalar_lea.vmem [#allocation1], 1
      %v372 = vld [vmem:[%s371] ss:$4 sm:$0xff]
      %v374 = vsel %vm369, %v372, 0.0
      %v375 = vadd.f32 %v368, %v374
      %vm376 = vcmp.eq.s32.totalorder %v306, 2
      %377 = vst [vmem:[#allocation1] sm:$0xff] %v305
      %s378 = scalar_lea.vmem [#allocation1], 2
      %v379 = vld [vmem:[%s378] ss:$4 sm:$0xff]
      %v381 = vsel %vm376, %v379, 0.0
      %v382 = vadd.f32 %v375, %v381
      %vm383 = vcmp.eq.s32.totalorder %v306, 3
      %384 = vst [vmem:[#allocation1] sm:$0xff] %v305
      %s385 = scalar_lea.vmem [#allocation1], 3
      %v386 = vld [vmem:[%s385] ss:$4 sm:$0xff]
      %v388 = vsel %vm383, %v386, 0.0
      %v389 = vadd.f32 %v382, %v388
      %v391 = vperm.slane %v389, 0
      %v392 = vperm.slane %v389, 1
      %v395 = vsub.f32 %v360, %v391
      %v396 = vsub.f32 %v361, %v392
      %v399 = vrot.slane %v396, 7
      %v400 = vsel %vm364, %v395, %v399
      %v402 = vlaneseq
      %vm403 = vcmp.ge.s32.totalorder %v402, 0
      %vm404 = vcmp.lt.s32.totalorder %v402, 256
      %vm405 = vmand %vm403, %vm404
      %406 = vst.msk [vmem:[%s289] sm:$0x3] %vm405, %v400
      %s407 = smul.u32 %s21, 256
      %s408 = sadd.s32 %s407, 0
      %v409 = vlaneseq
      %v410 = vand.u32 %v409, 127
      %v411 = vadd.s32 %v410, 128
      %v412 = vstv %s408
      %v413 = vadd.s32 %v412, %v410
      %v414 = vadd.s32 %v412, %v411
      %vm415 = vcmp.lt.s32.totalorder %v413, 256
      %vm416 = vcmp.lt.s32.totalorder %v414, 256
      %vm417 = vcmp.gt.f32.partialorder %v395, 0.35667494
      %vm418 = vcmp.gt.f32.partialorder %v396, 0.35667494
      %vm419 = vmand %vm415, %vm417
      %vm420 = vmand %vm416, %vm418
      %v421 = vsel %vm419, %v395, 0.0
      %v422 = vsel %vm420, %v396, 0.0
      %v423 = vsel %vm364, %v421, 0.0
      %v424 = vsel %vm364, %v422, 0.0
      %v425 = vadd.f32 %v423, %v424
      %426 = vadd.xlane.f32.xlu0 %v425
      %v427 = vpop.xlane.xlu0 %426
      %v428 = vrot.slane %v427, 4
      %v429 = vadd.f32 %v427, %v428
      %v430 = vrot.slane %v429, 2
      %v431 = vadd.f32 %v429, %v430
      %v432 = vrot.slane %v431, 1
      %v433 = vadd.f32 %v431, %v432
      %s434 = vtos %v433
      %v435 = vstv %s434
      %v436 = vadd.f32 %v435, 0.0
      %v437 = vsel %vm419, 1.0, 0.0
      %v438 = vsel %vm420, 1.0, 0.0
      %v439 = vsel %vm364, %v437, 0.0
      %v440 = vsel %vm364, %v438, 0.0
      %v441 = vadd.f32 %v439, %v440
      %442 = vadd.xlane.f32.xlu0 %v441
      %v443 = vpop.xlane.xlu0 %442
      %v444 = vrot.slane %v443, 4
      %v445 = vadd.f32 %v443, %v444
      %v446 = vrot.slane %v445, 2
      %v447 = vadd.f32 %v445, %v446
      %v448 = vrot.slane %v447, 1
      %v449 = vadd.f32 %v447, %v448
      %s450 = vtos %v449
      %v451 = vstv %s450
      %v452 = vadd.f32 %v451, 0.0
      %453 = vst [vmem:[%s297] sm:$0xff] %v436
      %454 = vst [vmem:[%s304] sm:$0xff] %v452
      %s455 = smul.u32 2, %s21
      %p456 = scmp.lt.s32.totalorder %s20, 1
      %s457 = scalar_select %p456, %s20, 1
      %p458 = scmp.lt.s32.totalorder %s455, 1
      %s459 = scalar_select %p458, %s455, 1
      %s460 = smul.addr %s457, 2
      %s461 = sadd.s32 %s459, %s460
      %s462 = scalar_lea.vmem %s2, %s461
      %p463 = scmp.lt.s32.totalorder %s20, 1
      %s464 = scalar_select %p463, %s20, 1
      %p465 = scmp.lt.s32.totalorder %s21, 0
      %s466 = scalar_select %p465, %s21, 0
      %s467 = sadd.s32 %s466, %s464
      %s468 = smul.addr %s467, 8
      %s469 = scalar_lea.vmem %s3, %s468
      %p470 = scmp.lt.s32.totalorder %s20, 1
      %s471 = scalar_select %p470, %s20, 1
      %p472 = scmp.lt.s32.totalorder %s21, 0
      %s473 = scalar_select %p472, %s21, 0
      %s474 = sadd.s32 %s473, %s471
      %s475 = smul.addr %s474, 8
      %s476 = scalar_lea.vmem %s4, %s475
      // Predicated region
      $region29: #{ohem_ce_loss.1} parent=27 // pred_check
        %p477 = pneg %p104
      $region30: #{ohem_ce_loss.1} parent=27 // pred_check_branch
        %479 = sbr.rel (%p477) target = $region32
      $region31: #{ohem_ce_loss.1} parent=27 // pred_region
        %s480 = smul.u32 2, %s21
      $region32: #{ohem_ce_loss.1} parent=27 // pred_fallthru
        _
      // Predicated region
      $region33: #{ohem_ce_loss.1} parent=27 // pred_check
        %p481 = pneg %p132
      $region34: #{ohem_ce_loss.1} parent=27 // pred_check_branch
        %483 = sbr.rel (%p481) target = $region36
      $region35: #{ohem_ce_loss.1} parent=27 // pred_region
        _
      $region36: #{ohem_ce_loss.1} parent=27 // pred_fallthru
        _
      // Predicated region
      $region37: #{ohem_ce_loss.1} parent=27 // pred_check
        %p484 = pneg %p160
      $region38: #{ohem_ce_loss.1} parent=27 // pred_check_branch
        %486 = sbr.rel (%p484) target = $region40
      $region39: #{ohem_ce_loss.1} parent=27 // pred_region
        _
      $region40: #{ohem_ce_loss.1} parent=27 // pred_fallthru
        _
    $region28: #{ohem_ce_loss.1} parent=5 // pred_fallthru
      _
    %p487 = scmp.le.s32.totalorder 2, %s11
    // Predicated region
    $region41: #{ohem_ce_loss.1} parent=5 // pred_check
      %p488 = pneg %p487
    $region42: #{ohem_ce_loss.1} parent=5 // pred_check_branch
      %490 = sbr.rel (%p488) target = $region44
    $region43: #{ohem_ce_loss.1} parent=5 // pred_region
      %s491 = ssub.s32 %s11, 2
      // Predicated region
      $region45: #{ohem_ce_loss.1} parent=43 // pred_check
        %p492 = pneg %p110
      $region46: #{ohem_ce_loss.1} parent=43 // pred_check_branch
        %494 = sbr.rel (%p492) target = $region48
      $region47: #{ohem_ce_loss.1} parent=43 // pred_region
        %s495 = smul.u32 2, %s23
        %p496 = scmp.lt.s32.totalorder %s22, 1
        %s497 = scalar_select %p496, %s22, 1
        %p498 = scmp.lt.s32.totalorder %s495, 1
        %s499 = scalar_select %p498, %s495, 1
        %s500 = smul.addr %s497, 2
        %s501 = sadd.s32 %s499, %s500
        %s502 = scalar_lea.vmem %s2, %s501
      $region48: #{ohem_ce_loss.1} parent=43 // pred_fallthru
        _
      // Predicated region
      $region49: #{ohem_ce_loss.1} parent=43 // pred_check
        %p503 = pneg %p138
      $region50: #{ohem_ce_loss.1} parent=43 // pred_check_branch
        %505 = sbr.rel (%p503) target = $region52
      $region51: #{ohem_ce_loss.1} parent=43 // pred_region
        %p506 = scmp.lt.s32.totalorder %s22, 1
        %s507 = scalar_select %p506, %s22, 1
        %p508 = scmp.lt.s32.totalorder %s23, 0
        %s509 = scalar_select %p508, %s23, 0
        %s510 = sadd.s32 %s509, %s507
        %s511 = smul.addr %s510, 8
        %s512 = scalar_lea.vmem %s3, %s511
      $region52: #{ohem_ce_loss.1} parent=43 // pred_fallthru
        _
      // Predicated region
      $region53: #{ohem_ce_loss.1} parent=43 // pred_check
        %p513 = pneg %p166
      $region54: #{ohem_ce_loss.1} parent=43 // pred_check_branch
        %515 = sbr.rel (%p513) target = $region56
      $region55: #{ohem_ce_loss.1} parent=43 // pred_region
        %p516 = scmp.lt.s32.totalorder %s22, 1
        %s517 = scalar_select %p516, %s22, 1
        %p518 = scmp.lt.s32.totalorder %s23, 0
        %s519 = scalar_select %p518, %s23, 0
        %s520 = sadd.s32 %s519, %s517
        %s521 = smul.addr %s520, 8
        %s522 = scalar_lea.vmem %s4, %s521
      $region56: #{ohem_ce_loss.1} parent=43 // pred_fallthru
        _
    $region44: #{ohem_ce_loss.1} parent=5 // pred_fallthru
      _
  $region6: #{ohem_ce_loss.1} parent=0 // loop_footer
    %s15 = sadd.s32 1, %s11
  $region7: #{ohem_ce_loss.1} parent=0 // loop_footer_branch
    %10 = sbr.rel target = $region3
  $region8: #{ohem_ce_loss.1} parent=0 // loop_exit
    _

</llo_original>
